<compile_context>
chip_gen: v7x
topology: tpu7x:2x2x1
jax: 0.10.0
libtpu: 0.0.40
codegen_flags: <defaults>
</compile_context>

<pallas_src>
import jax
import jax.numpy as jnp
from jax.experimental import pallas as pl
from jax.experimental.pallas import tpu as pltpu


def _identity_kernel(x_ref, o_ref):
    # Pure copy: lowers to vld/vst only, VALU stays free.
    o_ref[...] = x_ref[...]


# ~6 MiB per block.  BlockSpec double-buffers input and output tiles, so peak
# VMEM ~= 4 * block bytes = 24 MiB, comfortably under the explicit 48 MiB limit
# below (and under v7x's 64 MiB physical VMEM).
_TARGET_BLOCK_BYTES = 6 * 1024 * 1024
_VMEM_LIMIT_BYTES = 48 * 1024 * 1024


def _sublane_align(itemsize: int) -> int:
    """Packed-sublane row multiple for the dtype: f32->8, bf16->16, int8->32."""
    return 8 * max(1, 4 // max(1, itemsize))


def _pick_tile_rows(rows: int, cols: int, itemsize: int) -> int:
    """Choose a sublane-aligned row-tile so one block is ~_TARGET_BLOCK_BYTES."""
    align = _sublane_align(itemsize)
    bytes_per_row = max(1, cols * itemsize)
    tr = max(1, _TARGET_BLOCK_BYTES // bytes_per_row)
    tr = min(tr, rows)
    if tr >= align:
        tr -= tr % align
    if tr % align != 0 and tr != rows:
        tr = rows  # tiny arrays: single full-extent block (always legal)
    return int(tr)


def _compiler_params():
    return pltpu.CompilerParams(
        dimension_semantics=("parallel",),
        vmem_limit_bytes=_VMEM_LIMIT_BYTES,
    )


def _cost(bytes_accessed: int):
    return pl.CostEstimate(flops=0, transcendentals=0,
                           bytes_accessed=int(bytes_accessed))


def _pallas_copy_2d(x2: jax.Array, tile_rows: int, bytes_accessed: int) -> jax.Array:
    rows, cols = x2.shape
    grid = (pl.cdiv(rows, tile_rows),)  # ragged last block handled by Pallas
    return pl.pallas_call(
        _identity_kernel,
        out_shape=jax.ShapeDtypeStruct((rows, cols), x2.dtype),
        grid_spec=pltpu.PrefetchScalarGridSpec(
            num_scalar_prefetch=0,
            grid=grid,
            in_specs=[pl.BlockSpec((tile_rows, cols), lambda i: (i, 0))],
            out_specs=pl.BlockSpec((tile_rows, cols), lambda i: (i, 0)),
        ),
        compiler_params=_compiler_params(),
        cost_estimate=_cost(bytes_accessed),
    )(x2)


def _pallas_copy_1d(x1: jax.Array, bytes_accessed: int) -> jax.Array:
    """Lane-dense copy of a flat array whose length is not a multiple of 128."""
    (n,) = x1.shape
    itemsize = jnp.dtype(x1.dtype).itemsize
    # Block = multiple of 1024 elements (8 sublanes x 128 lanes) near the byte
    # target; only the final partial block gets masked stores.
    block = max(1024, (_TARGET_BLOCK_BYTES // max(1, itemsize)) // 1024 * 1024)
    if n <= block:
        block = n  # single full-extent block: always legal, any length
    grid = (pl.cdiv(n, block),)
    return pl.pallas_call(
        _identity_kernel,
        out_shape=jax.ShapeDtypeStruct((n,), x1.dtype),
        grid_spec=pltpu.PrefetchScalarGridSpec(
            num_scalar_prefetch=0,
            grid=grid,
            in_specs=[pl.BlockSpec((block,), lambda i: (i,))],
            out_specs=pl.BlockSpec((block,), lambda i: (i,)),
        ),
        compiler_params=_compiler_params(),
        cost_estimate=_cost(bytes_accessed),
    )(x1)


def identity(x: jax.Array, *, materialize: bool = True) -> jax.Array:
    """Pallas TPU implementation of Identity.forward (y = 1 * x, i.e. a copy).

    materialize=False short-circuits to `return x`: since JAX arrays are
    immutable this is semantically identical to PyTorch's clone and moves zero
    HBM bytes — the honest fastest path when no physical copy is required.
    materialize=True (default) runs the explicit on-chip copy kernel.
    """
    if not materialize or x.size == 0:
        return x

    orig_shape = x.shape
    total = int(x.size)
    itemsize = jnp.dtype(x.dtype).itemsize
    bytes_accessed = 2 * total * itemsize  # read + write

    if total % 128 == 0:
        # Lane-dense 2D view: cols = 128 * m (largest power of two <= 64 that
        # divides the 128-element count).  Identity is layout-agnostic, so the
        # reshape is free and every store is a full-width unmasked vst.
        n128 = total // 128
        cols_mult = 1
        for m in (64, 32, 16, 8, 4, 2):
            if n128 % m == 0:
                cols_mult = m
                break
        cols = 128 * cols_mult
        rows = total // cols
        x2 = x.reshape(rows, cols)
        tr = _pick_tile_rows(rows, cols, itemsize)
        out = _pallas_copy_2d(x2, tr, bytes_accessed)
    else:
        # Ragged total: flat 1D view with 1024-aligned blocks keeps the bulk of
        # the traffic lane-dense and bounds every block by the byte budget
        # regardless of the original last-dim size.
        out = _pallas_copy_1d(x.reshape(total), bytes_accessed)

    return out.reshape(orig_shape)


if __name__ == "__main__":
    key = jax.random.PRNGKey(0)
    # Small NCHW image-like input, consistent with plenoptic usage.
    x = jax.random.normal(key, (2, 4, 16, 16), dtype=jnp.float32)

    y = jax.block_until_ready(identity(x))
    assert y.shape == x.shape, (y.shape, x.shape)
    assert y.dtype == x.dtype, (y.dtype, x.dtype)
    assert bool(jnp.all(y == x)), "Identity kernel output does not match input"

    # Ragged-total path (120 elements, not a multiple of 128).
    xr = jax.random.normal(jax.random.PRNGKey(0), (3, 5, 8), dtype=jnp.float32)
    yr = jax.block_until_ready(identity(xr))
    assert yr.shape == xr.shape and yr.dtype == xr.dtype
    assert bool(jnp.all(yr == xr)), "Ragged identity output does not match input"

    # Zero-copy short-circuit (semantically equivalent, zero HBM traffic).
    assert identity(x, materialize=False) is x

    print("KERNEL_OK")
</pallas_src>

<mosaic_0001>
module attributes {stable_mosaic.version = 11 : i64} {
  func.func @_identity_kernel(%arg0: i32, %arg1: memref<1x2048xf32, #tpu.memory_space<vmem>>, %arg2: memref<1x2048xf32, #tpu.memory_space<vmem>>) attributes {dimension_semantics = [#tpu.dimension_semantics<parallel>], iteration_bounds = array<i64: 1>, scalar_prefetch = 0 : i64, scratch_operands = 0 : i64, tpu.core_type = #tpu.core_type<tc>, window_params = [{transform_indices = @transform_0, window_bounds = array<i64: 1, 2048>}, {transform_indices = @transform_1, window_bounds = array<i64: 1, 2048>}]} {
    %c0 = arith.constant 0 : index
    %c0_0 = arith.constant 0 : index
    %0 = vector.load %arg1[%c0, %c0_0] : memref<1x2048xf32, #tpu.memory_space<vmem>>, vector<1x2048xf32>
    %c0_1 = arith.constant 0 : index
    %c0_2 = arith.constant 0 : index
    %1 = vector.load %arg2[%c0_1, %c0_2] : memref<1x2048xf32, #tpu.memory_space<vmem>>, vector<1x2048xf32>
    tpu.vector_store %arg2[%c0_1, %c0_2], %0 {strides = array<i32>} : memref<1x2048xf32, #tpu.memory_space<vmem>>, vector<1x2048xf32>,
    return
  }
  func.func @transform_0(%arg0: i32) -> (i32, i32) {
    %c0_i32 = arith.constant 0 : i32
    %c0_i32_0 = arith.constant 0 : i32
    return %arg0, %c0_i32 : i32, i32
  }
  func.func @transform_1(%arg0: i32) -> (i32, i32) {
    %c0_i32 = arith.constant 0 : i32
    %c0_i32_0 = arith.constant 0 : i32
    return %arg0, %c0_i32 : i32, i32
  }
}

</mosaic_0001>

<llo_original>
// kernel: tpu_custom_call.1
$region0: #{tpu_custom_call.1}
  #allocation0 [shape = 'u32[]', space=smem, size = 0x4, offset = 0x4, fixed_abs, tag = 'smem constant byte address 0x4 - core index']
  #allocation1 [shape = 'u32[144,128]{1,0:T(1,128)}', space=vmem, size = 0x12000, scoped, tag = 'internal scratch']
  %s0 = inlined_call_operand.hbm [shape: f32[1,2048], index: 0, kind: input, shape index: {}]
  %s1 = inlined_call_operand.hbm [shape: f32[1,2048], index: 1, kind: output, shape index: {}]
  %s2 = sld [smem:[#allocation0]]
  $region18: #{tpu_custom_call.1} parent=0
    _
  %s4 = ssub.s32 1, %s2
  %s5 = scalar_select 0, %s4, %s2
  $region1: #{tpu_custom_call.1} parent=0
    #allocation2 [shape = 'u8[8192]{0}', space=vmem, size = 0x2000, scoped, tag = 'input window, operand 0, single buffered']
    #allocation3 [shape = 's32[1]{0}', space=sflag, size = 0x4, scoped, tag = 'scoped memory for tpu_custom_call.1']
    #allocation4 [shape = 's32[1]{0}', space=sflag, size = 0x4, scoped, tag = 'scoped memory for tpu_custom_call.1']
    #allocation5 [shape = 'u8[8192]{0}', space=vmem, size = 0x2000, scoped, tag = 'output window, operand 0, single buffered']
    %6 = vsyncpa [#allocation3], 0
    %7 = vsyncpa [#allocation4], 0
    // Predicated region
    $region2: #{tpu_custom_call.1} parent=1 // pred_check
      _
    $region3: #{tpu_custom_call.1} parent=1 // pred_check_branch
      %9 = sbr.rel (0) target = $region5
    $region4: #{tpu_custom_call.1} parent=1 // pred_region
      %s11 = ssub.s32 256, 256
      %12 = vsyncadd [#allocation3], %s11
      %s14 = sshll.u32 [#allocation2], 4
      %s15 = int_to_ptr.vmem [resolvable:$true] %s14
      %17 = dma.hbm_to_vmem [thread:$0]  %s0, 256, %s15, [#allocation3]
    $region5: #{tpu_custom_call.1} parent=1 // pred_fallthru
      _
    // Predicated region
    $region6: #{tpu_custom_call.1} parent=1 // pred_check
      _
    $region7: #{tpu_custom_call.1} parent=1 // pred_check_branch
      %19 = sbr.rel (0) target = $region9
    $region8: #{tpu_custom_call.1} parent=1 // pred_region
      %20 = dma.done [#allocation3], 256
    $region9: #{tpu_custom_call.1} parent=1 // pred_fallthru
      _
    %v21 = vld [vmem:[#allocation2] sm:$0xff]
    %v22 = vld [vmem:[#allocation2 + $0x8] sm:$0xff]
    %23 = vst [vmem:[#allocation5] sm:$0xff] %v21
    %24 = vst [vmem:[#allocation5 + $0x8] sm:$0xff] %v22
    // Predicated region
    $region10: #{tpu_custom_call.1} parent=1 // pred_check
      _
    $region11: #{tpu_custom_call.1} parent=1 // pred_check_branch
      %26 = sbr.rel (0) target = $region13
    $region12: #{tpu_custom_call.1} parent=1 // pred_region
      %s28 = ssub.s32 256, 256
      %29 = vsyncadd [#allocation4], %s28
      %s31 = sshll.u32 [#allocation5], 4
      %s32 = int_to_ptr.vmem [resolvable:$true] %s31
      %34 = dma.vmem_to_hbm [thread:$0]  %s32, 256, %s1, [#allocation4]
    $region13: #{tpu_custom_call.1} parent=1 // pred_fallthru
      _
    // Predicated region
    $region14: #{tpu_custom_call.1} parent=1 // pred_check
      _
    $region15: #{tpu_custom_call.1} parent=1 // pred_check_branch
      %36 = sbr.rel (0) target = $region17
    $region16: #{tpu_custom_call.1} parent=1 // pred_region
      %37 = dma.done [#allocation4], 256
    $region17: #{tpu_custom_call.1} parent=1 // pred_fallthru
      _
    %38 = vsyncpa [#allocation3], 1
    %39 = vsyncpa [#allocation4], 1

</llo_original>
